<compile_context>
chip_gen: v6e
topology: v6e:2x2x1
jax: 0.10.0
libtpu: 0.0.40
codegen_flags: <defaults>
</compile_context>

<pallas_src>
import functools

import jax
import jax.numpy as jnp
from jax.experimental import pallas as pl
from jax.experimental.pallas import tpu as pltpu

_EPS = 1e-6            # F.pairwise_distance default eps (added to the difference)
_LOG_CLAMP = -100.0    # torch binary_cross_entropy clamps log terms at -100
_TILE_BUDGET_BYTES = 24 * 1024 * 1024   # VMEM budget for pipelined input blocks + temporaries
_VMEM_LIMIT_BYTES = 40 * 1024 * 1024    # <= v7x 64 MiB physical; above v5e's 16 MiB default


def _contrastive_bce_kernel(x1_ref, x2_ref, t_ref, out_ref, *, batch, tile_rows):
    i = pl.program_id(0)
    row0 = i * tile_rows
    rows = row0 + jax.lax.broadcasted_iota(jnp.int32, (tile_rows, 1), 0)
    valid = rows < batch                                    # mask ragged last tile

    # Cast in-kernel (cheap VPU op) so bf16/f16 inputs need no f32 HBM copies.
    x1 = x1_ref[...].astype(jnp.float32)
    x2 = x2_ref[...].astype(jnp.float32)
    t = t_ref[...].astype(jnp.float32)

    diff = x1 - x2 + _EPS                                   # pairwise_distance eps
    d2 = jnp.sum(diff * diff, axis=-1, keepdims=True)       # (tile_rows, 1) == d**2
    s = 2.0 / (1.0 + jnp.exp(d2))                           # exp on EUP; exact divide
    log_s = jnp.maximum(jnp.log(s), _LOG_CLAMP)
    log_1ms = jnp.maximum(jnp.log(1.0 - s), _LOG_CLAMP)
    bce = -(t * log_s + (1.0 - t) * log_1ms)
    # Keep the select (NaN/Inf-safe for garbage padded rows); do NOT replace with a mul.
    bce = jnp.where(valid, bce, 0.0)
    # TODO(synk): for D <= ~256 a lane-densifying relayout of d2 (128 rows -> lanes)
    # would cut the sparse exp/log EUP issue slots by up to ~128x.
    out_ref[...] = jnp.sum(bce, keepdims=True).reshape(1, 1, 1)   # per-tile partial sum


def _round_up(x, m):
    return ((x + m - 1) // m) * m


def _pick_tile_rows(batch, dim, itemsize):
    # Per row of a tile:
    #   2 inputs x 2 pipeline buffers in the native dtype  -> 4 * itemsize * d_pad
    #   ~3 f32 temporaries (casts + diff)                   -> 3 * 4 * d_pad
    #   target block (tb, 1) padded to 128 lanes, x2 bufs   -> 2 * 128 * 4
    # where d_pad accounts for VMEM lane padding of the last dim.
    d_pad = _round_up(dim, 128)
    bytes_per_row = d_pad * (4 * itemsize + 3 * 4) + 2 * 128 * 4
    cap = _TILE_BUDGET_BYTES // bytes_per_row
    cap = max(32, (cap // 32) * 32)       # multiple of 32 rows: valid for f32/bf16/int8
    return min(2048, _round_up(batch, 32), cap)


def contrastive_cross_entropy_loss(output1, output2, target, confidence=None,
                                   push_pull_weight_ratio=3,
                                   push_pull_weight_decay=0.93,
                                   tile_rows=None):
    """JAX/Pallas equivalent of ContrastiveCrossEntropyLoss.forward.

    output1, output2: (B, D) float arrays (any float dtype; cast to f32 in-kernel)
    target:           (B,)   labels
    confidence:       (B,)   unused by forward (kept for signature parity)
    Returns: scalar f32 loss.
    """
    del confidence, push_pull_weight_ratio, push_pull_weight_decay  # unused by forward
    B, D = output1.shape
    t = target.astype(jnp.float32).reshape(-1, 1)           # tiny; cheap to prep here

    itemsize = max(jnp.dtype(output1.dtype).itemsize, jnp.dtype(output2.dtype).itemsize)
    tb = tile_rows if tile_rows is not None else _pick_tile_rows(B, D, itemsize)
    num_tiles = pl.cdiv(B, tb)

    kernel = functools.partial(_contrastive_bce_kernel, batch=B, tile_rows=tb)

    partials = pl.pallas_call(
        kernel,
        out_shape=jax.ShapeDtypeStruct((num_tiles, 1, 1), jnp.float32),
        grid=(num_tiles,),
        in_specs=[
            pl.BlockSpec((tb, D), lambda i: (i, 0)),
            pl.BlockSpec((tb, D), lambda i: (i, 0)),
            pl.BlockSpec((tb, 1), lambda i: (i, 0)),
        ],
        out_specs=pl.BlockSpec((1, 1, 1), lambda i: (i, 0, 0)),
        compiler_params=pltpu.CompilerParams(
            dimension_semantics=("parallel",),
            vmem_limit_bytes=_VMEM_LIMIT_BYTES),
    )(output1, output2, t)

    return jnp.sum(partials) / jnp.float32(B)


if __name__ == "__main__":
    key = jax.random.PRNGKey(0)
    k1, k2, k3, k4 = jax.random.split(key, 4)

    def ref_loss(o1, o2, tgt):
        diff = o1.astype(jnp.float32) - o2.astype(jnp.float32) + _EPS
        d2 = jnp.sum(diff * diff, axis=-1)
        s = 2.0 / (1.0 + jnp.exp(d2))
        return jnp.mean(-(tgt * jnp.maximum(jnp.log(s), _LOG_CLAMP)
                          + (1.0 - tgt) * jnp.maximum(jnp.log(1.0 - s), _LOG_CLAMP)))

    # Small shape matching the module's (B, D) embedding pairs.
    B, D = 8, 32
    output1 = jax.random.normal(k1, (B, D), dtype=jnp.float32)
    output2 = jax.random.normal(k2, (B, D), dtype=jnp.float32)
    target = (jax.random.uniform(k3, (B,)) > 0.5).astype(jnp.float32)
    confidence = jax.random.uniform(k4, (B,), dtype=jnp.float32)

    loss = contrastive_cross_entropy_loss(output1, output2, target, confidence)
    jax.block_until_ready(loss)
    ref = ref_loss(output1, output2, target)
    assert jnp.allclose(loss, ref, rtol=1e-4, atol=1e-4), (loss, ref)

    # Multi-tile / ragged-batch path, with small distances so both BCE branches
    # (log(s) and log(1-s)) are exercised away from the clamp.
    B2, D2 = 70, 32
    o1 = jax.random.normal(k1, (B2, D2), dtype=jnp.float32)
    o2 = o1 + 0.1 * jax.random.normal(k2, (B2, D2), dtype=jnp.float32)
    t2 = (jax.random.uniform(k3, (B2,)) > 0.5).astype(jnp.float32)
    loss2 = contrastive_cross_entropy_loss(o1, o2, t2, None, tile_rows=32)
    jax.block_until_ready(loss2)
    ref2 = ref_loss(o1, o2, t2)
    assert jnp.allclose(loss2, ref2, rtol=1e-4, atol=1e-4), (loss2, ref2)

    print("KERNEL_OK")
</pallas_src>

<mosaic_0001>
module attributes {stable_mosaic.version = 11 : i64} {
  func.func @_contrastive_bce_kernel(%arg0: i32, %arg1: memref<32x32xf32, #tpu.memory_space<vmem>>, %arg2: memref<32x32xf32, #tpu.memory_space<vmem>>, %arg3: memref<32x1xf32, #tpu.memory_space<vmem>>, %arg4: memref<1x1x1xf32, #tpu.memory_space<vmem>>) attributes {dimension_semantics = [#tpu.dimension_semantics<parallel>], iteration_bounds = array<i64: 1>, scalar_prefetch = 0 : i64, scratch_operands = 0 : i64, tpu.core_type = #tpu.core_type<tc>, window_params = [{transform_indices = @transform_0, window_bounds = array<i64: 32, 32>}, {transform_indices = @transform_1, window_bounds = array<i64: 32, 32>}, {transform_indices = @transform_2, window_bounds = array<i64: 32, 1>}, {transform_indices = @transform_3, window_bounds = array<i64: 1, 1, 1>}]} {
    %c32_i32 = arith.constant 32 : i32
    %0 = arith.muli %arg0, %c32_i32 : i32
    %1 = tpu.iota {dimensions = array<i32: 0>} : vector<32x1xi32>
    %2 = vector.broadcast %0 : i32 to vector<32x1xi32>
    %3 = arith.addi %2, %1 : vector<32x1xi32>
    %c8_i32 = arith.constant 8 : i32
    %4 = vector.broadcast %c8_i32 : i32 to vector<32x1xi32>
    %5 = arith.cmpi slt, %3, %4 : vector<32x1xi32>
    %c0 = arith.constant 0 : index
    %c0_0 = arith.constant 0 : index
    %6 = vector.load %arg1[%c0, %c0_0] : memref<32x32xf32, #tpu.memory_space<vmem>>, vector<32x32xf32>
    %c0_1 = arith.constant 0 : index
    %c0_2 = arith.constant 0 : index
    %7 = vector.load %arg2[%c0_1, %c0_2] : memref<32x32xf32, #tpu.memory_space<vmem>>, vector<32x32xf32>
    %c0_3 = arith.constant 0 : index
    %c0_4 = arith.constant 0 : index
    %8 = vector.load %arg3[%c0_3, %c0_4] : memref<32x1xf32, #tpu.memory_space<vmem>>, vector<32x1xf32>
    %9 = arith.subf %6, %7 : vector<32x32xf32>
    %cst = arith.constant 9.99999997E-7 : f32
    %10 = vector.broadcast %cst : f32 to vector<32x32xf32>
    %11 = arith.addf %9, %10 : vector<32x32xf32>
    %12 = arith.mulf %11, %11 : vector<32x32xf32>
    %cst_5 = arith.constant dense<0.000000e+00> : vector<32xf32>
    %13 = vector.multi_reduction <add>, %12, %cst_5 [1] : vector<32x32xf32> to vector<32xf32>
    %14 = vector.shape_cast %13 : vector<32xf32> to vector<32x1xf32>
    %15 = math.exp %14 : vector<32x1xf32>
    %cst_6 = arith.constant 1.000000e+00 : f32
    %16 = vector.broadcast %cst_6 : f32 to vector<32x1xf32>
    %17 = arith.addf %16, %15 : vector<32x1xf32>
    %cst_7 = arith.constant 2.000000e+00 : f32
    %18 = vector.broadcast %cst_7 : f32 to vector<32x1xf32>
    %19 = arith.divf %18, %17 : vector<32x1xf32>
    %20 = math.log %19 : vector<32x1xf32>
    %cst_8 = arith.constant -1.000000e+02 : f32
    %21 = vector.broadcast %cst_8 : f32 to vector<32x1xf32>
    %22 = arith.maximumf %20, %21 : vector<32x1xf32>
    %cst_9 = arith.constant 1.000000e+00 : f32
    %23 = vector.broadcast %cst_9 : f32 to vector<32x1xf32>
    %24 = arith.subf %23, %19 : vector<32x1xf32>
    %25 = math.log %24 : vector<32x1xf32>
    %cst_10 = arith.constant -1.000000e+02 : f32
    %26 = vector.broadcast %cst_10 : f32 to vector<32x1xf32>
    %27 = arith.maximumf %25, %26 : vector<32x1xf32>
    %28 = arith.mulf %8, %22 : vector<32x1xf32>
    %cst_11 = arith.constant 1.000000e+00 : f32
    %29 = vector.broadcast %cst_11 : f32 to vector<32x1xf32>
    %30 = arith.subf %29, %8 : vector<32x1xf32>
    %31 = arith.mulf %30, %27 : vector<32x1xf32>
    %32 = arith.addf %28, %31 : vector<32x1xf32>
    %cst_12 = arith.constant 0.000000e+00 : f32
    %33 = vector.broadcast %cst_12 : f32 to vector<32x1xf32>
    %34 = arith.subf %33, %32 : vector<32x1xf32>
    %cst_13 = arith.constant 0.000000e+00 : f32
    %35 = vector.broadcast %cst_13 : f32 to vector<32x1xf32>
    %36 = arith.select %5, %34, %35 : vector<32x1xi1>, vector<32x1xf32>
    %37 = vector.shape_cast %36 : vector<32x1xf32> to vector<1x32x1xf32>
    %cst_14 = arith.constant dense<0.000000e+00> : vector<1xf32>
    %38 = vector.multi_reduction <add>, %37, %cst_14 [1, 2] : vector<1x32x1xf32> to vector<1xf32>
    %39 = vector.shape_cast %38 : vector<1xf32> to vector<1x1x1xf32>
    %40 = vector.extract %39[0, 0, 0] : f32 from vector<1x1x1xf32>
    %41 = vector.broadcast %40 : f32 to vector<1x1xf32>
    %42 = vector.shape_cast %41 : vector<1x1xf32> to vector<1x1x1xf32>
    %c0_15 = arith.constant 0 : index
    %c0_16 = arith.constant 0 : index
    %c0_17 = arith.constant 0 : index
    %43 = vector.load %arg4[%c0_15, %c0_16, %c0_17] : memref<1x1x1xf32, #tpu.memory_space<vmem>>, vector<1x1x1xf32>
    tpu.vector_store %arg4[%c0_15, %c0_16, %c0_17], %42 {strides = array<i32>} : memref<1x1x1xf32, #tpu.memory_space<vmem>>, vector<1x1x1xf32>,
    return
  }
  func.func @transform_0(%arg0: i32) -> (i32, i32) {
    %c0_i32 = arith.constant 0 : i32
    %c0_i32_0 = arith.constant 0 : i32
    return %arg0, %c0_i32 : i32, i32
  }
  func.func @transform_1(%arg0: i32) -> (i32, i32) {
    %c0_i32 = arith.constant 0 : i32
    %c0_i32_0 = arith.constant 0 : i32
    return %arg0, %c0_i32 : i32, i32
  }
  func.func @transform_2(%arg0: i32) -> (i32, i32) {
    %c0_i32 = arith.constant 0 : i32
    %c0_i32_0 = arith.constant 0 : i32
    return %arg0, %c0_i32 : i32, i32
  }
  func.func @transform_3(%arg0: i32) -> (i32, i32, i32) {
    %c0_i32 = arith.constant 0 : i32
    %c0_i32_0 = arith.constant 0 : i32
    %c0_i32_1 = arith.constant 0 : i32
    return %arg0, %c0_i32, %c0_i32_0 : i32, i32, i32
  }
}

</mosaic_0001>

<llo_original>
// kernel: tpu_custom_call.1
$region0: #{tpu_custom_call.1}
  #allocation0 [shape = 'u32[]', space=smem, size = 0x4, offset = 0x4, fixed_abs, tag = 'smem constant byte address 0x4 - core index']
  #allocation1 [shape = 'u32[144,128]{1,0:T(1,128)}', space=vmem, size = 0x12000, scoped, tag = 'internal scratch']
  %s0 = inlined_call_operand.vmem [shape: f32[8,32], index: 0, kind: input, shape index: {}]
  %s1 = inlined_call_operand.hbm [shape: f32[8,32], index: 1, kind: input, shape index: {}]
  %s2 = inlined_call_operand.vmem [shape: f32[8,1], index: 2, kind: input, shape index: {}]
  %s3 = inlined_call_operand.hbm [shape: f32[1,1,1], index: 3, kind: output, shape index: {}]
  %s4 = sld [smem:[#allocation0]]
  $region26: #{tpu_custom_call.1} parent=0
    _
  %s6 = ssub.s32 1, %s4
  %s7 = scalar_select 0, %s6, %s4
  $region1: #{tpu_custom_call.1} parent=0
    #allocation2 [shape = 'u8[16384]{0}', space=vmem, size = 0x4000, scoped, tag = 'input window, operand 1, single buffered']
    #allocation3 [shape = 's32[1]{0}', space=sflag, size = 0x4, scoped, tag = 'scoped memory for tpu_custom_call.1']
    #allocation4 [shape = 's32[1]{0}', space=sflag, size = 0x4, scoped, tag = 'scoped memory for tpu_custom_call.1']
    #allocation5 [shape = 'u8[512]{0}', space=vmem, size = 0x400, scoped, tag = 'output window, operand 0, single buffered']
    %8 = vsyncpa [#allocation3], 0
    %9 = vsyncpa [#allocation4], 0
    // Predicated region
    $region2: #{tpu_custom_call.1} parent=1 // pred_check
      _
    $region3: #{tpu_custom_call.1} parent=1 // pred_check_branch
      %11 = sbr.rel (0) target = $region5
    $region4: #{tpu_custom_call.1} parent=1 // pred_region
      _
    $region5: #{tpu_custom_call.1} parent=1 // pred_fallthru
      _
    // Predicated region
    $region6: #{tpu_custom_call.1} parent=1 // pred_check
      _
    $region7: #{tpu_custom_call.1} parent=1 // pred_check_branch
      %13 = sbr.rel (0) target = $region9
    $region8: #{tpu_custom_call.1} parent=1 // pred_region
      %s15 = ssub.s32 512, 128
      %16 = vsyncadd [#allocation3], %s15
      %s17 = sshll.u32 [#allocation2], 4
      %s18 = int_to_ptr.vmem [resolvable:$true] %s17
      %23 = dma.hbm_to_vmem [thread:$0]  %s1, 128, %s18, [#allocation3], 128, 128, 8
    $region9: #{tpu_custom_call.1} parent=1 // pred_fallthru
      _
    // Predicated region
    $region10: #{tpu_custom_call.1} parent=1 // pred_check
      _
    $region11: #{tpu_custom_call.1} parent=1 // pred_check_branch
      %25 = sbr.rel (0) target = $region13
    $region12: #{tpu_custom_call.1} parent=1 // pred_region
      _
    $region13: #{tpu_custom_call.1} parent=1 // pred_fallthru
      _
    // Predicated region
    $region14: #{tpu_custom_call.1} parent=1 // pred_check
      _
    $region15: #{tpu_custom_call.1} parent=1 // pred_check_branch
      %27 = sbr.rel (0) target = $region17
    $region16: #{tpu_custom_call.1} parent=1 // pred_region
      %28 = dma.done [#allocation3], 512
    $region17: #{tpu_custom_call.1} parent=1 // pred_fallthru
      _
    %s29 = smul.u32 0, 32
    %v30 = vlaneseq
    %v31 = vshrl.u32 %v30, 7
    %v32 = vadd.s32 %v31, 8
    %v33 = vadd.s32 %v31, 16
    %v34 = vadd.s32 %v31, 24
    %v35 = vstv %s29
    %v36 = vadd.s32 %v35, %v31
    %v37 = vadd.s32 %v35, %v32
    %v38 = vadd.s32 %v35, %v33
    %v39 = vadd.s32 %v35, %v34
    %vm40 = vcmp.lt.s32.totalorder %v36, 8
    %vm41 = vcmp.lt.s32.totalorder %v37, 8
    %vm42 = vcmp.lt.s32.totalorder %v38, 8
    %vm43 = vcmp.lt.s32.totalorder %v39, 8
    %v44 = vld [vmem:[%s0] sm:$0xff]
    %v45 = vld [vmem:[%s0 + $0x8] sm:$0xff]
    %v46 = vld [vmem:[%s0 + $0x10] sm:$0xff]
    %v47 = vld [vmem:[%s0 + $0x18] sm:$0xff]
    %v48 = vld [vmem:[#allocation2] sm:$0xff]
    %v49 = vld [vmem:[#allocation2 + $0x8] sm:$0xff]
    %v50 = vld [vmem:[#allocation2 + $0x10] sm:$0xff]
    %v51 = vld [vmem:[#allocation2 + $0x18] sm:$0xff]
    %v52 = vld [vmem:[%s2] sm:$0xff]
    %v53 = vld [vmem:[%s2 + $0x8] sm:$0xff]
    %v54 = vld [vmem:[%s2 + $0x10] sm:$0xff]
    %v55 = vld [vmem:[%s2 + $0x18] sm:$0xff]
    %v56 = vsub.f32 %v44, %v48
    %v57 = vsub.f32 %v45, %v49
    %v58 = vsub.f32 %v46, %v50
    %v59 = vsub.f32 %v47, %v51
    %v60 = vadd.f32 %v56, 1e-06
    %v61 = vadd.f32 %v57, 1e-06
    %v62 = vadd.f32 %v58, 1e-06
    %v63 = vadd.f32 %v59, 1e-06
    %v64 = vmul.f32 %v60, %v60
    %v65 = vmul.f32 %v61, %v61
    %v66 = vmul.f32 %v62, %v62
    %v67 = vmul.f32 %v63, %v63
    %vm68 = vcmask 261120
    %v69 = vsel %vm68, %v64, 0.0
    %70 = vadd.xlane.f32.xlu0 %v69
    %v71 = vpop.xlane.xlu0 %70
    %v72 = vsel %vm68, %v65, 0.0
    %73 = vadd.xlane.f32.xlu0 %v72
    %v74 = vpop.xlane.xlu0 %73
    %v75 = vsel %vm68, %v66, 0.0
    %76 = vadd.xlane.f32.xlu0 %v75
    %v77 = vpop.xlane.xlu0 %76
    %v78 = vsel %vm68, %v67, 0.0
    %79 = vadd.xlane.f32.xlu0 %v78
    %v80 = vpop.xlane.xlu0 %79
    %v81 = vmul.f32 %v71, 1.442695
    %v82 = vpow.pop %v81
    %v83 = vmul.f32 %v74, 1.442695
    %v84 = vpow.pop %v83
    %v85 = vmul.f32 %v77, 1.442695
    %v86 = vpow.pop %v85
    %v87 = vmul.f32 %v80, 1.442695
    %v88 = vpow.pop %v87
    %v89 = vadd.f32 %v82, 1.0
    %v90 = vadd.f32 %v84, 1.0
    %v91 = vadd.f32 %v86, 1.0
    %v92 = vadd.f32 %v88, 1.0
    %v93 = vrcp.pop %v89
    %v94 = vmul.f32 2.0, %v93
    %v95 = vrcp.pop %v90
    %v96 = vmul.f32 2.0, %v95
    %v97 = vrcp.pop %v91
    %v98 = vmul.f32 2.0, %v97
    %v99 = vrcp.pop %v92
    %v100 = vmul.f32 2.0, %v99
    %v101 = vlog2.pop %v94
    %v102 = vmul.f32 %v101, 0.6931472
    %v103 = vlog2.pop %v96
    %v104 = vmul.f32 %v103, 0.6931472
    %v105 = vlog2.pop %v98
    %v106 = vmul.f32 %v105, 0.6931472
    %v107 = vlog2.pop %v100
    %v108 = vmul.f32 %v107, 0.6931472
    %v109 = vmax.f32 %v102, -100.0
    %v110 = vmax.f32 %v104, -100.0
    %v111 = vmax.f32 %v106, -100.0
    %v112 = vmax.f32 %v108, -100.0
    %v113 = vsub.f32 1.0, %v94
    %v114 = vsub.f32 1.0, %v96
    %v115 = vsub.f32 1.0, %v98
    %v116 = vsub.f32 1.0, %v100
    %v117 = vlog2.pop %v113
    %v118 = vmul.f32 %v117, 0.6931472
    %v119 = vlog2.pop %v114
    %v120 = vmul.f32 %v119, 0.6931472
    %v121 = vlog2.pop %v115
    %v122 = vmul.f32 %v121, 0.6931472
    %v123 = vlog2.pop %v116
    %v124 = vmul.f32 %v123, 0.6931472
    %v125 = vmax.f32 %v118, -100.0
    %v126 = vmax.f32 %v120, -100.0
    %v127 = vmax.f32 %v122, -100.0
    %v128 = vmax.f32 %v124, -100.0
    %v129 = vmul.f32 %v52, %v109
    %v130 = vmul.f32 %v53, %v110
    %v131 = vmul.f32 %v54, %v111
    %v132 = vmul.f32 %v55, %v112
    %v133 = vsub.f32 1.0, %v52
    %v134 = vsub.f32 1.0, %v53
    %v135 = vsub.f32 1.0, %v54
    %v136 = vsub.f32 1.0, %v55
    %v137 = vmul.f32 %v133, %v125
    %v138 = vmul.f32 %v134, %v126
    %v139 = vmul.f32 %v135, %v127
    %v140 = vmul.f32 %v136, %v128
    %v141 = vadd.f32 %v129, %v137
    %v142 = vadd.f32 %v130, %v138
    %v143 = vadd.f32 %v131, %v139
    %v144 = vadd.f32 %v132, %v140
    %v145 = vsub.f32 0.0, %v141
    %v146 = vsub.f32 0.0, %v142
    %v147 = vsub.f32 0.0, %v143
    %v148 = vsub.f32 0.0, %v144
    %v149 = vsel %vm40, %v145, 0.0
    %v150 = vsel %vm41, %v146, 0.0
    %v151 = vsel %vm42, %v147, 0.0
    %v152 = vsel %vm43, %v148, 0.0
    %vm153 = vcmask 7168
    %v154 = vsel %vm153, %v149, 0.0
    %v155 = vsel %vm153, %v150, 0.0
    %v156 = vadd.f32 %v154, %v155
    %v157 = vsel %vm153, %v151, 0.0
    %v158 = vadd.f32 %v156, %v157
    %v159 = vsel %vm153, %v152, 0.0
    %v160 = vadd.f32 %v158, %v159
    %161 = vadd.xlane.f32.xlu0 %v160
    %v162 = vpop.xlane.xlu0 %161
    %v163 = vrot.slane %v162, 4
    %v164 = vadd.f32 %v162, %v163
    %v165 = vrot.slane %v164, 2
    %v166 = vadd.f32 %v164, %v165
    %v167 = vrot.slane %v166, 1
    %v168 = vadd.f32 %v166, %v167
    %s169 = vtos %v168
    %v170 = vstv %s169
    %vm171 = vcmask 0
    %172 = vst.msk [vmem:[#allocation5] sm:$0x1] %vm171, %v170
    // Predicated region
    $region18: #{tpu_custom_call.1} parent=1 // pred_check
      _
    $region19: #{tpu_custom_call.1} parent=1 // pred_check_branch
      %174 = sbr.rel (0) target = $region21
    $region20: #{tpu_custom_call.1} parent=1 // pred_region
      %s176 = ssub.s32 16, 16
      %177 = vsyncadd [#allocation4], %s176
      %s179 = sshll.u32 [#allocation5], 4
      %s180 = int_to_ptr.vmem [resolvable:$true] %s179
      %182 = dma.vmem_to_hbm [thread:$0]  %s180, 16, %s3, [#allocation4]
    $region21: #{tpu_custom_call.1} parent=1 // pred_fallthru
      _
    // Predicated region
    $region22: #{tpu_custom_call.1} parent=1 // pred_check
      _
    $region23: #{tpu_custom_call.1} parent=1 // pred_check_branch
      %184 = sbr.rel (0) target = $region25
    $region24: #{tpu_custom_call.1} parent=1 // pred_region
      %185 = dma.done [#allocation4], 16
    $region25: #{tpu_custom_call.1} parent=1 // pred_fallthru
      _
    %186 = vsyncpa [#allocation3], 1
    %187 = vsyncpa [#allocation4], 1

</llo_original>
